<compile_context>
chip_gen: v7x
topology: tpu7x:2x2x1
jax: 0.10.0
libtpu: 0.0.40
codegen_flags: <defaults>
</compile_context>

<pallas_src>
import jax
import jax.numpy as jnp
from jax.experimental import pallas as pl
from jax.experimental.pallas import tpu as pltpu


def _innerprod_kernel(img_ref, scale_ref, sound_ref, bias_ref, out_ref):
    # img_ref:   (Bt, C)      VMEM   image features for this batch tile
    # scale_ref: (1, C)       VMEM   per-channel scale (broadcast over batch)
    # sound_ref: (Bt, C, T)   VMEM   sound features; spatial axis on lanes
    # bias_ref:  (1,)         SMEM   scalar bias
    # out_ref:   (Bt, T)      VMEM   lane-dense output tile
    #
    # Cast operands to f32 BEFORE the scale multiply (matches the f32 PyTorch
    # reference even for bf16 inputs), then feed the MXU in the sound dtype
    # with f32 accumulation: the C-contraction streams through the MXU and no
    # (Bt, C, T) f32 temporary is materialized in VMEM.
    scaled = img_ref[...].astype(jnp.float32) * scale_ref[...].astype(jnp.float32)
    scaled = scaled.astype(sound_ref.dtype)                      # (Bt, C)
    bias = bias_ref[0]
    bt = out_ref.shape[0]
    for b in range(bt):                                          # static unroll, small
        z = jnp.dot(scaled[b:b + 1, :], sound_ref[b],
                    preferred_element_type=jnp.float32)          # (1, T) f32
        out_ref[b:b + 1, :] = (z + bias).astype(out_ref.dtype)


def _vmem_capacity_bytes():
    """Physical VMEM of the current generation; conservative fallback."""
    try:
        cap = getattr(pltpu.get_tpu_info(), "vmem_capacity_bytes", None)
        if cap:
            return int(cap)
    except Exception:
        pass
    return 64 * 1024 * 1024  # v7x per-TensorCore VMEM (most restrictive)


def _choose_tiles(B, C, HW, in_itemsize, out_itemsize, sound_budget_bytes):
    """Pick (batch tile, spatial tile).

    Batch tile: divides B (img/scale blocks stay resident across the inner HW
    sweep, no ragged batch block) and respects the (8,128) block rule
    (multiple of 8, or the full dim).  Spatial tile: largest multiple of 128
    whose double-buffered sound + output slabs fit the byte budget; no
    artificial upper cap.
    """
    if B <= 8:
        bt = B
    elif B % 8 == 0:
        bt = 8
    else:
        bt = B  # rare shape; full batch per step is always a legal block dim
    per_hw_elem = 2 * bt * (C * in_itemsize + out_itemsize)  # double-buffered bytes
    t = max(128, (sound_budget_bytes // per_hw_elem) // 128 * 128)
    if t >= HW:
        t = HW
    return bt, t


def inner_prod(feat_img, feat_sound, scale, bias, *, sound_budget_bytes=None):
    """feat_img: (B, C), feat_sound: (B, C, H, W), scale: (C,), bias: (1,)
       ->  (B, 1, H, W)"""
    B, C, H, W = feat_sound.shape
    HW = H * W
    sound_flat = feat_sound.reshape(B, C, HW)
    scale2d = scale.reshape(1, C)
    bias1d = bias.reshape(1).astype(jnp.float32)

    in_itemsize = jnp.dtype(feat_sound.dtype).itemsize
    out_itemsize = in_itemsize

    vmem_cap = _vmem_capacity_bytes()
    if sound_budget_bytes is None:
        # ~5/16 of physical VMEM for double-buffered sound+out slabs:
        # ~40 MiB on v5e/v6e (128 MiB VMEM), ~20 MiB on v7x (64 MiB / TC).
        sound_budget_bytes = (vmem_cap * 5) // 16

    bt, t_hw = _choose_tiles(B, C, HW, in_itemsize, out_itemsize,
                             sound_budget_bytes)
    grid = (B // bt, pl.cdiv(HW, t_hw))

    # vmem limit = actual working set (double-buffered slabs) + headroom,
    # clamped well under physical VMEM (<= 48 MiB on v7x).
    sound_slab = bt * C * t_hw * in_itemsize
    out_slab = bt * t_hw * out_itemsize
    vmem_limit = 2 * sound_slab + 2 * out_slab + 2 * (bt + 1) * C * 4 + (4 << 20)
    vmem_limit = max(16 << 20, min(vmem_limit, (vmem_cap * 3) // 4))

    bytes_accessed = (
        sound_flat.size * in_itemsize                        # dominant term
        + feat_img.size * jnp.dtype(feat_img.dtype).itemsize
        + scale.size * jnp.dtype(scale.dtype).itemsize
        + B * HW * out_itemsize                              # output
    )

    out = pl.pallas_call(
        _innerprod_kernel,
        out_shape=jax.ShapeDtypeStruct((B, HW), feat_sound.dtype),
        grid_spec=pltpu.PrefetchScalarGridSpec(
            num_scalar_prefetch=0,
            grid=grid,
            in_specs=[
                pl.BlockSpec((bt, C), lambda b, t: (b, 0)),           # feat_img
                pl.BlockSpec((1, C), lambda b, t: (0, 0)),            # scale
                pl.BlockSpec((bt, C, t_hw), lambda b, t: (b, 0, t)),  # feat_sound
                pl.BlockSpec(memory_space=pltpu.MemorySpace.SMEM),    # bias scalar
            ],
            out_specs=pl.BlockSpec((bt, t_hw), lambda b, t: (b, t)),
        ),
        compiler_params=pltpu.CompilerParams(
            dimension_semantics=("parallel", "parallel"),
            vmem_limit_bytes=int(vmem_limit),
        ),
        cost_estimate=pl.CostEstimate(
            flops=2 * B * C * HW,
            transcendentals=0,
            bytes_accessed=int(bytes_accessed),
        ),
    )(feat_img, scale2d, sound_flat, bias1d)

    return out.reshape(B, 1, H, W)


# TODO(synk): forward_nosum / forward_pixelwise variants of the module are not
# translated here; only the default forward() path is implemented.


if __name__ == "__main__":
    key = jax.random.PRNGKey(0)
    k_img, k_sound = jax.random.split(key)

    # Case 1: module-default shapes (single tile per axis).
    B, C, H, W = 2, 4, 16, 16
    feat_img = jax.random.normal(k_img, (B, C), dtype=jnp.float32)
    feat_sound = jax.random.normal(k_sound, (B, C, H, W), dtype=jnp.float32)
    scale = jnp.ones((C,), dtype=jnp.float32)        # nn.Parameter(torch.ones)
    bias = jnp.zeros((1,), dtype=jnp.float32)        # nn.Parameter(torch.zeros)

    z = inner_prod(feat_img, feat_sound, scale, bias)
    jax.block_until_ready(z)
    ref = jnp.einsum("bc,bchw->bhw", feat_img * scale[None, :],
                     feat_sound)[:, None, :, :] + bias[0]
    assert z.shape == (B, 1, H, W)
    assert jnp.allclose(z, ref, atol=1e-5, rtol=1e-5)

    # Case 2: force multiple spatial tiles + a ragged last tile (tiny budget)
    # to exercise the tiling / padding path.
    B2, C2, H2, W2 = 2, 4, 16, 24                    # HW=384 -> tiles of 256, 128(padded)
    fi2 = jax.random.normal(k_img, (B2, C2), dtype=jnp.float32) * 0.5
    fs2 = jax.random.normal(k_sound, (B2, C2, H2, W2), dtype=jnp.float32) * 0.5
    sc2 = jnp.linspace(0.5, 1.5, C2, dtype=jnp.float32)
    bi2 = jnp.full((1,), 0.25, dtype=jnp.float32)
    z2 = inner_prod(fi2, fs2, sc2, bi2, sound_budget_bytes=24_000)
    jax.block_until_ready(z2)
    ref2 = jnp.einsum("bc,bchw->bhw", fi2 * sc2[None, :],
                      fs2)[:, None, :, :] + bi2[0]
    assert jnp.allclose(z2, ref2, atol=1e-5, rtol=1e-5)

    print("KERNEL_OK")
</pallas_src>

<mosaic_0001>
module attributes {stable_mosaic.version = 11 : i64} {
  func.func @_innerprod_kernel(%arg0: i32, %arg1: i32, %arg2: memref<2x4xf32, #tpu.memory_space<vmem>>, %arg3: memref<1x4xf32, #tpu.memory_space<vmem>>, %arg4: memref<2x4x256xf32, #tpu.memory_space<vmem>>, %arg5: memref<1xf32, #tpu.memory_space<smem>>, %arg6: memref<2x256xf32, #tpu.memory_space<vmem>>) attributes {dimension_semantics = [#tpu.dimension_semantics<parallel>, #tpu.dimension_semantics<parallel>], iteration_bounds = array<i64: 1, 1>, scalar_prefetch = 0 : i64, scratch_operands = 0 : i64, tpu.core_type = #tpu.core_type<tc>, window_params = [{transform_indices = @transform_0, window_bounds = array<i64: 2, 4>}, {pipeline_mode = #tpu.pipeline_mode<synchronous>, transform_indices = @transform_1, window_bounds = array<i64: 1, 4>}, {transform_indices = @transform_2, window_bounds = array<i64: 2, 4, 256>}, {transform_indices = @transform_3, window_bounds = array<i64: 1>}, {transform_indices = @transform_4, window_bounds = array<i64: 2, 256>}]} {
    %c0 = arith.constant 0 : index
    %c0_0 = arith.constant 0 : index
    %0 = vector.load %arg2[%c0, %c0_0] : memref<2x4xf32, #tpu.memory_space<vmem>>, vector<2x4xf32>
    %c0_1 = arith.constant 0 : index
    %c0_2 = arith.constant 0 : index
    %1 = vector.load %arg3[%c0_1, %c0_2] : memref<1x4xf32, #tpu.memory_space<vmem>>, vector<1x4xf32>
    %2 = vector.broadcast %1 : vector<1x4xf32> to vector<2x4xf32>
    %3 = arith.mulf %0, %2 : vector<2x4xf32>
    %c0_3 = arith.constant 0 : index
    %4 = memref.load %arg5[%c0_3] : memref<1xf32, #tpu.memory_space<smem>>
    %5 = vector.extract_strided_slice %3 {offsets = [0, 0], sizes = [1, 4], strides = [1, 1]} : vector<2x4xf32> to vector<1x4xf32>
    %c0_4 = arith.constant 0 : index
    %c0_5 = arith.constant 0 : index
    %c0_6 = arith.constant 0 : index
    %6 = vector.load %arg4[%c0_4, %c0_5, %c0_6] : memref<2x4x256xf32, #tpu.memory_space<vmem>>, vector<1x4x256xf32>
    %7 = vector.shape_cast %6 : vector<1x4x256xf32> to vector<4x256xf32>
    %cst = arith.constant dense<0.000000e+00> : vector<1x256xf32>
    %8 = tpu.matmul %5, %7, %cst {dimension_numbers = #tpu.dot_dimension_numbers<[1], [0], [0], [1], [0, 0, 1, 1], [], []>} : vector<1x4xf32>, vector<4x256xf32>, vector<1x256xf32> -> vector<1x256xf32>
    %9 = vector.broadcast %4 : f32 to vector<1x256xf32>
    %10 = arith.addf %8, %9 : vector<1x256xf32>
    %c0_7 = arith.constant 0 : index
    %c0_8 = arith.constant 0 : index
    %11 = vector.load %arg6[%c0_7, %c0_8] : memref<2x256xf32, #tpu.memory_space<vmem>>, vector<1x256xf32>
    tpu.vector_store %arg6[%c0_7, %c0_8], %10 {strides = array<i32>} : memref<2x256xf32, #tpu.memory_space<vmem>>, vector<1x256xf32>,
    %12 = vector.extract_strided_slice %3 {offsets = [1, 0], sizes = [1, 4], strides = [1, 1]} : vector<2x4xf32> to vector<1x4xf32>
    %c1 = arith.constant 1 : index
    %c0_9 = arith.constant 0 : index
    %c0_10 = arith.constant 0 : index
    %13 = vector.load %arg4[%c1, %c0_9, %c0_10] : memref<2x4x256xf32, #tpu.memory_space<vmem>>, vector<1x4x256xf32>
    %14 = vector.shape_cast %13 : vector<1x4x256xf32> to vector<4x256xf32>
    %cst_11 = arith.constant dense<0.000000e+00> : vector<1x256xf32>
    %15 = tpu.matmul %12, %14, %cst_11 {dimension_numbers = #tpu.dot_dimension_numbers<[1], [0], [0], [1], [0, 0, 1, 1], [], []>} : vector<1x4xf32>, vector<4x256xf32>, vector<1x256xf32> -> vector<1x256xf32>
    %16 = vector.broadcast %4 : f32 to vector<1x256xf32>
    %17 = arith.addf %15, %16 : vector<1x256xf32>
    %c1_12 = arith.constant 1 : index
    %c0_13 = arith.constant 0 : index
    %18 = vector.load %arg6[%c1_12, %c0_13] : memref<2x256xf32, #tpu.memory_space<vmem>>, vector<1x256xf32>
    tpu.vector_store %arg6[%c1_12, %c0_13], %17 {strides = array<i32>} : memref<2x256xf32, #tpu.memory_space<vmem>>, vector<1x256xf32>,
    return
  }
  func.func @transform_0(%arg0: i32, %arg1: i32) -> (i32, i32) {
    %c0_i32 = arith.constant 0 : i32
    %c0_i32_0 = arith.constant 0 : i32
    return %arg0, %c0_i32 : i32, i32
  }
  func.func @transform_1(%arg0: i32, %arg1: i32) -> (i32, i32) {
    %c0_i32 = arith.constant 0 : i32
    %c0_i32_0 = arith.constant 0 : i32
    %c0_i32_1 = arith.constant 0 : i32
    return %c0_i32, %c0_i32_0 : i32, i32
  }
  func.func @transform_2(%arg0: i32, %arg1: i32) -> (i32, i32, i32) {
    %c0_i32 = arith.constant 0 : i32
    %c0_i32_0 = arith.constant 0 : i32
    return %arg0, %c0_i32, %arg1 : i32, i32, i32
  }
  func.func @transform_3(%arg0: i32, %arg1: i32) -> i32 {
    %c0_i32 = arith.constant 0 : i32
    %c0_i32_0 = arith.constant 0 : i32
    return %c0_i32 : i32
  }
  func.func @transform_4(%arg0: i32, %arg1: i32) -> (i32, i32) {
    %c0_i32 = arith.constant 0 : i32
    return %arg0, %arg1 : i32, i32
  }
}

</mosaic_0001>

<llo_original>
// kernel: tpu_custom_call.1
$region0: #{tpu_custom_call.1}
  #allocation0 [shape = 'u32[]', space=smem, size = 0x4, offset = 0x4, fixed_abs, tag = 'smem constant byte address 0x4 - core index']
  #allocation1 [shape = 'u32[144,128]{1,0:T(1,128)}', space=vmem, size = 0x12000, scoped, tag = 'internal scratch']
  #allocation2 [shape = 'f32[1]{0:T(128)S(6)}', space=smem, size = 0x200, scoped, tag = 'scoped memory for tpu_custom_call.1']
  %s0 = inlined_call_operand.vmem [shape: f32[2,4], index: 0, kind: input, shape index: {}]
  %s1 = inlined_call_operand.vmem [shape: f32[1,4], index: 1, kind: input, shape index: {}]
  %s2 = inlined_call_operand.hbm [shape: f32[2,4,256], index: 2, kind: input, shape index: {}]
  %s3 = inlined_call_operand.<no memory space> [shape: f32[1], index: 3, kind: input, shape index: {}]
  %s4 = inlined_call_operand.hbm [shape: f32[2,256], index: 4, kind: output, shape index: {}]
  %s5 = sld [smem:[#allocation0]]
  $region30: #{tpu_custom_call.1} parent=0
    _
  %s7 = ssub.s32 1, %s5
  %s8 = scalar_select 0, %s7, %s5
  %9 = sst [smem:[#allocation2]] %s3
  $region1: #{tpu_custom_call.1} parent=0
    #allocation3 [shape = 'u8[8192]{0}', space=vmem, size = 0x2000, scoped, tag = 'input window, operand 2, single buffered']
    #allocation4 [shape = 's32[1]{0}', space=sflag, size = 0x4, scoped, tag = 'scoped memory for tpu_custom_call.1']
    #allocation5 [shape = 's32[1]{0}', space=sflag, size = 0x4, scoped, tag = 'scoped memory for tpu_custom_call.1']
    #allocation6 [shape = 'u8[2048]{0}', space=vmem, size = 0x800, scoped, tag = 'output window, operand 0, single buffered']
    %10 = vsyncpa [#allocation4], 0
    %11 = vsyncpa [#allocation5], 0
    // Predicated region
    $region2: #{tpu_custom_call.1} parent=1 // pred_check
      _
    $region3: #{tpu_custom_call.1} parent=1 // pred_check_branch
      %13 = sbr.rel (0) target = $region5
    $region4: #{tpu_custom_call.1} parent=1 // pred_region
      _
    $region5: #{tpu_custom_call.1} parent=1 // pred_fallthru
      _
    // Predicated region
    $region6: #{tpu_custom_call.1} parent=1 // pred_check
      _
    $region7: #{tpu_custom_call.1} parent=1 // pred_check_branch
      %15 = sbr.rel (0) target = $region9
    $region8: #{tpu_custom_call.1} parent=1 // pred_region
      _
    $region9: #{tpu_custom_call.1} parent=1 // pred_fallthru
      _
    // Predicated region
    $region10: #{tpu_custom_call.1} parent=1 // pred_check
      _
    $region11: #{tpu_custom_call.1} parent=1 // pred_check_branch
      %17 = sbr.rel (0) target = $region13
    $region12: #{tpu_custom_call.1} parent=1 // pred_region
      %s19 = ssub.s32 256, 256
      %20 = vsyncadd [#allocation4], %s19
      %s21 = sshll.u32 [#allocation3], 4
      %s22 = int_to_ptr.vmem [resolvable:$true] %s21
      %27 = dma.hbm_to_vmem [thread:$0]  %s2, 256, %s22, [#allocation4], 128, 128, 8
    $region13: #{tpu_custom_call.1} parent=1 // pred_fallthru
      _
    // Predicated region
    $region14: #{tpu_custom_call.1} parent=1 // pred_check
      _
    $region15: #{tpu_custom_call.1} parent=1 // pred_check_branch
      %29 = sbr.rel (0) target = $region17
    $region16: #{tpu_custom_call.1} parent=1 // pred_region
      _
    $region17: #{tpu_custom_call.1} parent=1 // pred_fallthru
      _
    // Predicated region
    $region18: #{tpu_custom_call.1} parent=1 // pred_check
      _
    $region19: #{tpu_custom_call.1} parent=1 // pred_check_branch
      %31 = sbr.rel (0) target = $region21
    $region20: #{tpu_custom_call.1} parent=1 // pred_region
      %32 = dma.done [#allocation4], 256
    $region21: #{tpu_custom_call.1} parent=1 // pred_fallthru
      _
    %v33 = vld [vmem:[%s0] sm:$0x3]
    %v34 = vld [vmem:[%s1] sm:$0x1]
    %v36 = vlaneseq
    %v37 = vshrl.u32 %v36, 7
    %v38 = vsub.s32 0, %v37
    %v39 = vrot.slane %v34, %v38
    %v41 = vmul.f32 %v33, %v39
    %s42 = sld [smem:[#allocation2]]
    %v43 = vld [vmem:[#allocation3] sm:$0xff]
    %v44 = vstv %s42
    %v46 = vcombine.high %v43, %v43
    %vm47 = vcmask 31744
    %v49 = vsel %vm47, %v41, 0
    %vm51 = vcmask 1043456
    %v52 = vsel %vm51, %v43, 0
    %v54 = vsel %vm51, %v46, 0
    %56 = vmatprep.subr.mxu0 %v54
    %57 = vmatpush1.msra.mxu0 %v52
    %58 = vmatprep.subr.mxu0 0.0
    %59 = vmatpush1.msra.mxu0 0.0
    %60 = vmatprep.subr.mxu0 0.0
    %61 = vmatpush1.msra.mxu0 0.0
    %62 = vmatprep.subr.mxu0 0.0
    %63 = vmatpush1.msra.mxu0 0.0
    %64 = vmatprep.subr.mxu0 0.0
    %65 = vmatpush1.msra.mxu0 0.0
    %66 = vmatprep.subr.mxu0 0.0
    %67 = vmatpush1.msra.mxu0 0.0
    %68 = vmatprep.subr.mxu0 0.0
    %69 = vmatpush1.msra.mxu0 0.0
    %70 = vmatprep.subr.mxu0 0.0
    %71 = vmatpush1.msra.mxu0 0.0
    %72 = vmatprep.subr.mxu0 0.0
    %73 = vmatpush1.msra.mxu0 0.0
    %74 = vmatprep.subr.mxu0 0.0
    %75 = vmatpush1.msra.mxu0 0.0
    %76 = vmatprep.subr.mxu0 0.0
    %77 = vmatpush1.msra.mxu0 0.0
    %78 = vmatprep.subr.mxu0 0.0
    %79 = vmatpush1.msra.mxu0 0.0
    %80 = vmatprep.subr.mxu0 0.0
    %81 = vmatpush1.msra.mxu0 0.0
    %82 = vmatprep.subr.mxu0 0.0
    %83 = vmatpush1.msra.mxu0 0.0
    %84 = vmatprep.subr.mxu0 0.0
    %85 = vmatpush1.msra.mxu0 0.0
    %86 = vmatprep.subr.mxu0 0.0
    %87 = vmatpush1.msra.mxu0 0.0
    %88 = vmatprep.subr.mxu0 0.0
    %89 = vmatpush1.msra.mxu0 0.0
    %90 = vmatprep.subr.mxu0 0.0
    %91 = vmatpush1.msra.mxu0 0.0
    %92 = vmatprep.subr.mxu0 0.0
    %93 = vmatpush1.msra.mxu0 0.0
    %94 = vmatprep.subr.mxu0 0.0
    %95 = vmatpush1.msra.mxu0 0.0
    %96 = vmatprep.subr.mxu0 0.0
    %97 = vmatpush1.msra.mxu0 0.0
    %98 = vmatprep.subr.mxu0 0.0
    %99 = vmatpush1.msra.mxu0 0.0
    %100 = vmatprep.subr.mxu0 0.0
    %101 = vmatpush1.msra.mxu0 0.0
    %102 = vmatprep.subr.mxu0 0.0
    %103 = vmatpush1.msra.mxu0 0.0
    %104 = vmatprep.subr.mxu0 0.0
    %105 = vmatpush1.msra.mxu0 0.0
    %106 = vmatprep.subr.mxu0 0.0
    %107 = vmatpush1.msra.mxu0 0.0
    %108 = vmatprep.subr.mxu0 0.0
    %109 = vmatpush1.msra.mxu0 0.0
    %110 = vmatprep.subr.mxu0 0.0
    %111 = vmatpush1.msra.mxu0 0.0
    %112 = vmatprep.subr.mxu0 0.0
    %113 = vmatpush1.msra.mxu0 0.0
    %114 = vmatprep.subr.mxu0 0.0
    %115 = vmatpush1.msra.mxu0 0.0
    %116 = vmatprep.subr.mxu0 0.0
    %117 = vmatpush1.msra.mxu0 0.0
    %118 = vmatprep.subr.mxu0 0.0
    %119 = vmatpush1.msra.mxu0 0.0
    %120 = vmatprep.mubr.f32.mxu0 0.0
    %121 = vmatmul.mubr.f32.gmra.mrb[0].mxu0 %v49
    %v122 = vpop.f32.mrb[0].mxu0
    %v123 = vadd.f32 %v44, %v122
    %v124 = vpop.f32.mrb[0].mxu0
    %v125 = vadd.f32 %v44, %v124
    %126 = vdwg.mxu0
    %v129 = vcombine.low %v123, %v125
    %v131 = vunpack.c.l.s4 1966171168
    %v132 = vunpack.c.0.s8 %v131
    %v133 = vlaneseq
    %v134 = vshrl.u32 %v133, 7
    %v135 = vsub.s32 %v132, %v134
    %v136 = vrot.slane %v129, %v135
    %v138 = vunpack.c.l.s4 1966171168
    %v139 = vunpack.c.0.s8 %v138
    %v140 = vlaneseq
    %v141 = vshrl.u32 %v140, 7
    %v142 = vsub.s32 %v139, %v141
    %v143 = vrot.slane %v136, %v142
    %v145 = vlaneseq
    %vm146 = vcmp.ge.s32.totalorder %v145, 0
    %vm147 = vcmp.lt.s32.totalorder %v145, 256
    %vm148 = vmand %vm146, %vm147
    %149 = vst.msk [vmem:[#allocation6] ss:$2 sm:$0x3] %vm148, %v143
    %s150 = scalar_lea.vmem [#allocation3], 8
    %v151 = vld [vmem:[%s150] sm:$0xff]
    %v152 = vrot.slane %v41, 1
    %v154 = vcombine.high %v151, %v151
    %v155 = vsel %vm47, %v152, 0
    %v157 = vsel %vm51, %v151, 0
    %v159 = vsel %vm51, %v154, 0
    %161 = vmatprep.subr.mxu0 %v159
    %162 = vmatpush1.msra.mxu0 %v157
    %163 = vmatprep.subr.mxu0 0.0
    %164 = vmatpush1.msra.mxu0 0.0
    %165 = vmatprep.subr.mxu0 0.0
    %166 = vmatpush1.msra.mxu0 0.0
    %167 = vmatprep.subr.mxu0 0.0
    %168 = vmatpush1.msra.mxu0 0.0
    %169 = vmatprep.subr.mxu0 0.0
    %170 = vmatpush1.msra.mxu0 0.0
    %171 = vmatprep.subr.mxu0 0.0
    %172 = vmatpush1.msra.mxu0 0.0
    %173 = vmatprep.subr.mxu0 0.0
    %174 = vmatpush1.msra.mxu0 0.0
    %175 = vmatprep.subr.mxu0 0.0
    %176 = vmatpush1.msra.mxu0 0.0
    %177 = vmatprep.subr.mxu0 0.0
    %178 = vmatpush1.msra.mxu0 0.0
    %179 = vmatprep.subr.mxu0 0.0
    %180 = vmatpush1.msra.mxu0 0.0
    %181 = vmatprep.subr.mxu0 0.0
    %182 = vmatpush1.msra.mxu0 0.0
    %183 = vmatprep.subr.mxu0 0.0
    %184 = vmatpush1.msra.mxu0 0.0
    %185 = vmatprep.subr.mxu0 0.0
    %186 = vmatpush1.msra.mxu0 0.0
    %187 = vmatprep.subr.mxu0 0.0
    %188 = vmatpush1.msra.mxu0 0.0
    %189 = vmatprep.subr.mxu0 0.0
    %190 = vmatpush1.msra.mxu0 0.0
    %191 = vmatprep.subr.mxu0 0.0
    %192 = vmatpush1.msra.mxu0 0.0
    %193 = vmatprep.subr.mxu0 0.0
    %194 = vmatpush1.msra.mxu0 0.0
    %195 = vmatprep.subr.mxu0 0.0
    %196 = vmatpush1.msra.mxu0 0.0
    %197 = vmatprep.subr.mxu0 0.0
    %198 = vmatpush1.msra.mxu0 0.0
    %199 = vmatprep.subr.mxu0 0.0
    %200 = vmatpush1.msra.mxu0 0.0
    %201 = vmatprep.subr.mxu0 0.0
    %202 = vmatpush1.msra.mxu0 0.0
    %203 = vmatprep.subr.mxu0 0.0
    %204 = vmatpush1.msra.mxu0 0.0
    %205 = vmatprep.subr.mxu0 0.0
    %206 = vmatpush1.msra.mxu0 0.0
    %207 = vmatprep.subr.mxu0 0.0
    %208 = vmatpush1.msra.mxu0 0.0
    %209 = vmatprep.subr.mxu0 0.0
    %210 = vmatpush1.msra.mxu0 0.0
    %211 = vmatprep.subr.mxu0 0.0
    %212 = vmatpush1.msra.mxu0 0.0
    %213 = vmatprep.subr.mxu0 0.0
    %214 = vmatpush1.msra.mxu0 0.0
    %215 = vmatprep.subr.mxu0 0.0
    %216 = vmatpush1.msra.mxu0 0.0
    %217 = vmatprep.subr.mxu0 0.0
    %218 = vmatpush1.msra.mxu0 0.0
    %219 = vmatprep.subr.mxu0 0.0
    %220 = vmatpush1.msra.mxu0 0.0
    %221 = vmatprep.subr.mxu0 0.0
    %222 = vmatpush1.msra.mxu0 0.0
    %223 = vmatprep.subr.mxu0 0.0
    %224 = vmatpush1.msra.mxu0 0.0
    %225 = vmatprep.mubr.f32.mxu0 0.0
    %226 = vmatmul.mubr.f32.gmra.mrb[0].mxu0 %v155
    %v227 = vpop.f32.mrb[0].mxu0
    %v228 = vadd.f32 %v44, %v227
    %v229 = vpop.f32.mrb[0].mxu0
    %v230 = vadd.f32 %v44, %v229
    %231 = vdwg.mxu0
    %v234 = vcombine.low %v228, %v230
    %v236 = vunpack.c.l.s4 1966171168
    %v237 = vunpack.c.0.s8 %v236
    %v238 = vlaneseq
    %v239 = vshrl.u32 %v238, 7
    %v240 = vsub.s32 %v237, %v239
    %v241 = vrot.slane %v234, %v240
    %v243 = vunpack.c.l.s4 1966171168
    %v244 = vunpack.c.0.s8 %v243
    %v245 = vlaneseq
    %v246 = vshrl.u32 %v245, 7
    %v247 = vsub.s32 %v244, %v246
    %v248 = vrot.slane %v241, %v247
    %s250 = scalar_lea.vmem [#allocation6], 1
    %251 = vst.msk [vmem:[%s250] ss:$2 sm:$0x3] %vm148, %v248
    // Predicated region
    $region22: #{tpu_custom_call.1} parent=1 // pred_check
      _
    $region23: #{tpu_custom_call.1} parent=1 // pred_check_branch
      %253 = sbr.rel (0) target = $region25
    $region24: #{tpu_custom_call.1} parent=1 // pred_region
      %s255 = ssub.s32 64, 64
      %256 = vsyncadd [#allocation5], %s255
      %s258 = sshll.u32 [#allocation6], 4
      %s259 = int_to_ptr.vmem [resolvable:$true] %s258
      %261 = dma.vmem_to_hbm [thread:$0]  %s259, 64, %s4, [#allocation5]
    $region25: #{tpu_custom_call.1} parent=1 // pred_fallthru
      _
    // Predicated region
    $region26: #{tpu_custom_call.1} parent=1 // pred_check
      _
    $region27: #{tpu_custom_call.1} parent=1 // pred_check_branch
      %263 = sbr.rel (0) target = $region29
    $region28: #{tpu_custom_call.1} parent=1 // pred_region
      %264 = dma.done [#allocation5], 64
    $region29: #{tpu_custom_call.1} parent=1 // pred_fallthru
      _
    %265 = vsyncpa [#allocation4], 1
    %266 = vsyncpa [#allocation5], 1

</llo_original>
